<compile_context>
chip_gen: v7x
topology: tpu7x:2x2x1
jax: 0.10.0
libtpu: 0.0.40
codegen_flags: <defaults>
</compile_context>

<pallas_src>
from typing import NamedTuple, Optional

import jax
import jax.numpy as jnp
from jax import lax
from jax.experimental import pallas as pl
from jax.experimental.pallas import tpu as pltpu


# ---------------------------------------------------------------------------
# helpers
# ---------------------------------------------------------------------------
def _round_up(x, m):
    return (x + m - 1) // m * m


def _sublane_multiple(dtype):
    # minimum second-minor tile: 8 for 4-byte, 16 for 2-byte, 32 for 1-byte
    return {4: 8, 2: 16, 1: 32}.get(jnp.dtype(dtype).itemsize, 8)


def _vmem_capacity_bytes():
    try:
        return int(pltpu.get_tpu_info().vmem_capacity_bytes)
    except Exception:           # capability probe only; conservative default
        return 64 * 2**20       # v7x-sized


# ---------------------------------------------------------------------------
# one-time parameter packing (hoisted out of the per-call forward path)
# ---------------------------------------------------------------------------
class PackedLUTParams(NamedTuple):
    table: jax.Array                 # (V_pad, D_pad) zero-padded embedding table
    proj_w: Optional[jax.Array]      # (D_pad, D_pad), (in, out) layout, or None
    proj_b: Optional[jax.Array]      # (1, D_pad) float32, or None
    vocab_size: int                  # original V
    dim: int                         # original D


def pack_tokenizer_lut_params(table, proj_w=None, proj_b=None, *,
                              table_dtype=None, weight_dtype=None):
    """Pack TokenizerLUTConditioner parameters once, at load time.

    table:  (V, D) nn.Embedding weight.
    proj_w: (D, D) nn.Linear weight in torch (out, in) layout; None => Identity.
    proj_b: (D,)   nn.Linear bias; None => Identity.
    table_dtype / weight_dtype: optional casts (e.g. bf16 on v6e/v7x: halves
        DMA bytes, doubles MXU rate; in-kernel accumulation stays f32).
    """
    V, D = table.shape
    t_dtype = jnp.dtype(table_dtype) if table_dtype is not None else table.dtype
    D_pad = _round_up(D, 128)                               # lane-dense embed dim
    V_pad = _round_up(V, _sublane_multiple(t_dtype))        # dtype-aware sublane pad
    table_p = jnp.zeros((V_pad, D_pad), t_dtype).at[:V, :D].set(table.astype(t_dtype))

    w_p = b_p = None
    if proj_w is not None:
        w_dtype = jnp.dtype(weight_dtype) if weight_dtype is not None else proj_w.dtype
        # nn.Linear computes x @ W^T + b; pre-transpose once to (in, out).
        # TODO(synk): for D_pad >= ~2.5K f32 the resident W approaches the v7x
        # 64 MiB budget -- pass weight_dtype=bf16 or tile the output dim.
        w_p = jnp.zeros((D_pad, D_pad), w_dtype).at[:D, :D].set(proj_w.T.astype(w_dtype))
        b_p = jnp.zeros((1, D_pad), jnp.float32).at[0, :D].set(proj_b.astype(jnp.float32))
    return PackedLUTParams(table_p, w_p, b_p, V, D)


# ---------------------------------------------------------------------------
# kernels: resident-table path (table/W DMA'd once, stay in VMEM)
# ---------------------------------------------------------------------------
def _resident_proj_kernel(ids_ref, mask_ref, table_ref, w_ref, b_ref, out_ref):
    # ids_ref:   (TM, 1)      int32   token ids (sublane-major)
    # mask_ref:  (TM, 1)      float32 attention mask (1.0 / 0.0)
    # table_ref: (V_pad, Dp)  VMEM-resident table (constant block index)
    # w_ref:     (Dp, Dp)     projection weight, (in, out) layout
    # b_ref:     (1, Dp)      projection bias
    # out_ref:   (TM, Dp)     lane-dense output tile
    tm = out_ref.shape[0]
    vp = table_ref.shape[0]
    iota = lax.broadcasted_iota(jnp.int32, (tm, vp), 1)
    onehot = (ids_ref[...] == iota).astype(table_ref.dtype)          # (TM, V_pad)
    emb = jnp.dot(onehot, table_ref[...], preferred_element_type=jnp.float32)
    proj = jnp.dot(emb.astype(w_ref.dtype), w_ref[...],
                   preferred_element_type=jnp.float32) + b_ref[...].astype(jnp.float32)
    out_ref[...] = (proj * mask_ref[...]).astype(out_ref.dtype)


def _resident_noproj_kernel(ids_ref, mask_ref, table_ref, out_ref):
    # Identity projection: single matmul, write straight to the output block.
    tm = out_ref.shape[0]
    vp = table_ref.shape[0]
    iota = lax.broadcasted_iota(jnp.int32, (tm, vp), 1)
    onehot = (ids_ref[...] == iota).astype(table_ref.dtype)
    emb = jnp.dot(onehot, table_ref[...], preferred_element_type=jnp.float32)
    out_ref[...] = (emb * mask_ref[...]).astype(out_ref.dtype)


# ---------------------------------------------------------------------------
# kernels: DMA row-gather path (large vocabularies; table stays in HBM)
# ---------------------------------------------------------------------------
def _gather_rows(ids_ref, table_hbm, gbuf, sem, base, tm):
    # Issue TM independent row DMAs (they overlap each other), then drain.
    # All copies are the same size, so waiting TM times on an identically
    # shaped descriptor consumes exactly the TM completions.
    @pl.loop(0, tm)
    def _issue(r):
        row = ids_ref[base + r]
        pltpu.make_async_copy(table_hbm.at[pl.ds(row, 1)],
                              gbuf.at[pl.ds(r, 1)], sem.at[0]).start()

    @pl.loop(0, tm)
    def _drain(r):
        pltpu.make_async_copy(table_hbm.at[pl.ds(0, 1)],
                              gbuf.at[pl.ds(r, 1)], sem.at[0]).wait()


def _gather_proj_kernel(ids_ref, mask_ref, table_hbm, w_ref, b_ref, out_ref,
                        gbuf, sem):
    # ids_ref:   (N_pad,)     int32 in SMEM (scalar prefetch)
    # table_hbm: (V_pad, Dp)  left in HBM (memory_space=pl.ANY)
    # gbuf:      (TM, Dp)     VMEM row-gather buffer
    tm = out_ref.shape[0]
    base = pl.program_id(0) * tm
    _gather_rows(ids_ref, table_hbm, gbuf, sem, base, tm)
    proj = jnp.dot(gbuf[...].astype(w_ref.dtype), w_ref[...],
                   preferred_element_type=jnp.float32) + b_ref[...].astype(jnp.float32)
    out_ref[...] = (proj * mask_ref[...]).astype(out_ref.dtype)


def _gather_noproj_kernel(ids_ref, mask_ref, table_hbm, out_ref, gbuf, sem):
    tm = out_ref.shape[0]
    base = pl.program_id(0) * tm
    _gather_rows(ids_ref, table_hbm, gbuf, sem, base, tm)
    out_ref[...] = (gbuf[...].astype(jnp.float32) * mask_ref[...]).astype(out_ref.dtype)


# ---------------------------------------------------------------------------
# wrapper
# ---------------------------------------------------------------------------
def tokenizer_lut_conditioner_forward(input_ids, attention_mask, params,
                                      *, row_tile=256, path="auto"):
    """TokenizerLUTConditioner.forward (post-tokenizer) on TPU via Pallas.

    input_ids:      [B, L] int32 token ids from the HF tokenizer
    attention_mask: [B, L] bool (or 0/1 ints)
    params:         PackedLUTParams from pack_tokenizer_lut_params()
    path:           "auto" | "resident" | "gather"
    returns (embeddings [B, L, D] float32, attention_mask [B, L] bool)
    """
    B, L = input_ids.shape
    table_p = params.table
    V_pad, D_pad = table_p.shape
    V, D = params.vocab_size, params.dim
    use_proj = params.proj_w is not None

    N = B * L
    # TM=256 fills the v6e/v7x 256x256 MXU; fall back to 128 for small N so
    # the "parallel" row axis still gives >=2 tiles (v7x megacore) when it can.
    TM = row_tile if N > row_tile else 128
    N_pad = _round_up(max(N, 1), TM)
    grid_rows = N_pad // TM

    itemsize = table_p.dtype.itemsize
    table_bytes = V_pad * D_pad * itemsize
    w_bytes = (D_pad * D_pad * params.proj_w.dtype.itemsize + 2 * D_pad * 4) if use_proj else 0
    out_bytes = 2 * TM * D_pad * 4            # double-buffered f32 output tiles
    small_bytes = 4 * TM * 128 * 4            # ids/mask tiles (lane-padded, x2 buffers)

    phys = _vmem_capacity_bytes()
    vmem_cap = 48 * 2**20 if phys <= 64 * 2**20 else 96 * 2**20   # v7x vs v5e/v6e

    if path == "auto":
        resident_est = table_bytes + w_bytes + out_bytes + small_bytes
        path = "resident" if resident_est + resident_est // 4 <= vmem_cap else "gather"

    # --- per-call operand packing: only the small ids/mask arrays ------------
    mask = jnp.zeros((N_pad, 1), jnp.float32).at[:N, 0].set(
        attention_mask.reshape(N).astype(jnp.float32))
    ids_flat = jnp.zeros((N_pad,), jnp.int32).at[:N].set(
        input_ids.reshape(N).astype(jnp.int32))

    out_shape = jax.ShapeDtypeStruct((N_pad, D_pad), jnp.float32)

    if path == "resident":
        ids = ids_flat[:, None]                                    # sublane-major
        est = table_bytes + w_bytes + out_bytes + small_bytes
        vmem_limit = int(min(vmem_cap, max(16 * 2**20, est + est // 2)))
        cp = pltpu.CompilerParams(dimension_semantics=("parallel",),
                                  vmem_limit_bytes=vmem_limit)
        row_spec = pl.BlockSpec((TM, 1), lambda i: (i, 0))
        table_spec = pl.BlockSpec((V_pad, D_pad), lambda i: (0, 0))  # fetched once
        out_spec = pl.BlockSpec((TM, D_pad), lambda i: (i, 0))
        if use_proj:
            out = pl.pallas_call(
                _resident_proj_kernel,
                out_shape=out_shape,
                grid_spec=pltpu.PrefetchScalarGridSpec(
                    num_scalar_prefetch=0, grid=(grid_rows,),
                    in_specs=[row_spec, row_spec, table_spec,
                              pl.BlockSpec((D_pad, D_pad), lambda i: (0, 0)),
                              pl.BlockSpec((1, D_pad), lambda i: (0, 0))],
                    out_specs=out_spec),
                compiler_params=cp,
            )(ids, mask, table_p, params.proj_w, params.proj_b)
        else:
            out = pl.pallas_call(
                _resident_noproj_kernel,
                out_shape=out_shape,
                grid_spec=pltpu.PrefetchScalarGridSpec(
                    num_scalar_prefetch=0, grid=(grid_rows,),
                    in_specs=[row_spec, row_spec, table_spec],
                    out_specs=out_spec),
                compiler_params=cp,
            )(ids, mask, table_p)

    elif path == "gather":
        # Clamp ids: row DMAs have no runtime bounds check.
        ids_sp = jnp.clip(ids_flat, 0, V - 1)
        gbuf_bytes = TM * D_pad * itemsize
        est = w_bytes + out_bytes + small_bytes + gbuf_bytes
        vmem_limit = int(min(vmem_cap, max(16 * 2**20, est + est // 2)))
        cp = pltpu.CompilerParams(dimension_semantics=("parallel",),
                                  vmem_limit_bytes=vmem_limit)
        mask_spec = pl.BlockSpec((TM, 1), lambda i, ids_sref: (i, 0))
        out_spec = pl.BlockSpec((TM, D_pad), lambda i, ids_sref: (i, 0))
        table_spec = pl.BlockSpec(memory_space=pl.ANY)               # stays in HBM
        scratch = [pltpu.VMEM((TM, D_pad), table_p.dtype),
                   pltpu.SemaphoreType.DMA((1,))]
        if use_proj:
            out = pl.pallas_call(
                _gather_proj_kernel,
                out_shape=out_shape,
                grid_spec=pltpu.PrefetchScalarGridSpec(
                    num_scalar_prefetch=1, grid=(grid_rows,),
                    in_specs=[mask_spec, table_spec,
                              pl.BlockSpec((D_pad, D_pad), lambda i, ids_sref: (0, 0)),
                              pl.BlockSpec((1, D_pad), lambda i, ids_sref: (0, 0))],
                    out_specs=out_spec,
                    scratch_shapes=scratch),
                compiler_params=cp,
            )(ids_sp, mask, table_p, params.proj_w, params.proj_b)
        else:
            out = pl.pallas_call(
                _gather_noproj_kernel,
                out_shape=out_shape,
                grid_spec=pltpu.PrefetchScalarGridSpec(
                    num_scalar_prefetch=1, grid=(grid_rows,),
                    in_specs=[mask_spec, table_spec],
                    out_specs=out_spec,
                    scratch_shapes=scratch),
                compiler_params=cp,
            )(ids_sp, mask, table_p)
    else:
        raise ValueError(f"unknown path: {path!r}")

    embeddings = out[:N, :D].reshape(B, L, D)
    return embeddings, attention_mask.astype(jnp.bool_)


# ---------------------------------------------------------------------------
# self-test
# ---------------------------------------------------------------------------
if __name__ == "__main__":
    # Small shapes consistent with the module's forward:
    #   batch B=2, max_length L=8, output_dim D=32, tokenizer vocab V=64
    B, L, D, V = 2, 8, 32, 64

    key = jax.random.PRNGKey(0)
    k_tab, k_w, k_b, k_ids = jax.random.split(key, 4)

    # nn.Embedding(len(tokenizer), output_dim): N(0, 1) init
    table = jax.random.normal(k_tab, (V, D), dtype=jnp.float32)
    # nn.Linear(D, D): uniform(-1/sqrt(D), 1/sqrt(D)) init
    bound = 1.0 / jnp.sqrt(jnp.float32(D))
    proj_w = jax.random.uniform(k_w, (D, D), minval=-bound, maxval=bound, dtype=jnp.float32)
    proj_b = jax.random.uniform(k_b, (D,), minval=-bound, maxval=bound, dtype=jnp.float32)

    # TODO(synk): the HF AutoTokenizer (string -> token ids, padding/truncation)
    # has no Pallas equivalent; simulate its output with deterministic ids + mask.
    input_ids = jax.random.randint(k_ids, (B, L), 0, V, dtype=jnp.int32)
    seq_lens = jnp.array([L, L - 3], dtype=jnp.int32)                # second sample padded
    attention_mask = jnp.arange(L)[None, :] < seq_lens[:, None]      # [B, L] bool
    input_ids = jnp.where(attention_mask, input_ids, 0)              # pad token id 0

    maskf = attention_mask[..., None].astype(jnp.float32)
    ref_proj = (table[input_ids] @ proj_w.T + proj_b) * maskf
    ref_noproj = table[input_ids] * maskf

    # Packing happens ONCE, outside the per-call forward path.
    params_proj = pack_tokenizer_lut_params(table, proj_w, proj_b)
    params_noproj = pack_tokenizer_lut_params(table)

    # "auto" resolves to the resident-table path at this vocab size; also
    # force the DMA row-gather path so both code paths are validated.
    for path in ("auto", "gather"):
        emb, mask_out = tokenizer_lut_conditioner_forward(
            input_ids, attention_mask, params_proj, path=path)
        emb = jax.block_until_ready(emb)
        mask_out = jax.block_until_ready(mask_out)
        assert emb.shape == (B, L, D) and emb.dtype == jnp.float32
        assert mask_out.shape == (B, L) and mask_out.dtype == jnp.bool_
        assert jnp.allclose(emb, ref_proj, atol=1e-5, rtol=1e-5), path
        assert bool(jnp.all(mask_out == attention_mask))

        emb2, _ = tokenizer_lut_conditioner_forward(
            input_ids, attention_mask, params_noproj, path=path)
        emb2 = jax.block_until_ready(emb2)
        assert jnp.allclose(emb2, ref_noproj, atol=1e-5, rtol=1e-5), path

    print("KERNEL_OK")
</pallas_src>

<mosaic_0001>
module attributes {stable_mosaic.version = 11 : i64} {
  func.func @_resident_proj_kernel(%arg0: i32, %arg1: memref<128x1xi32, #tpu.memory_space<vmem>>, %arg2: memref<128x1xf32, #tpu.memory_space<vmem>>, %arg3: memref<64x128xf32, #tpu.memory_space<vmem>>, %arg4: memref<128x128xf32, #tpu.memory_space<vmem>>, %arg5: memref<1x128xf32, #tpu.memory_space<vmem>>, %arg6: memref<128x128xf32, #tpu.memory_space<vmem>>) attributes {dimension_semantics = [#tpu.dimension_semantics<parallel>], iteration_bounds = array<i64: 1>, scalar_prefetch = 0 : i64, scratch_operands = 0 : i64, tpu.core_type = #tpu.core_type<tc>, window_params = [{transform_indices = @transform_0, window_bounds = array<i64: 128, 1>}, {transform_indices = @transform_1, window_bounds = array<i64: 128, 1>}, {pipeline_mode = #tpu.pipeline_mode<synchronous>, transform_indices = @transform_2, window_bounds = array<i64: 64, 128>}, {pipeline_mode = #tpu.pipeline_mode<synchronous>, transform_indices = @transform_3, window_bounds = array<i64: 128, 128>}, {pipeline_mode = #tpu.pipeline_mode<synchronous>, transform_indices = @transform_4, window_bounds = array<i64: 1, 128>}, {transform_indices = @transform_5, window_bounds = array<i64: 128, 128>}]} {
    %0 = tpu.iota {dimensions = array<i32: 1>} : vector<128x64xi32>
    %c0 = arith.constant 0 : index
    %c0_0 = arith.constant 0 : index
    %1 = vector.load %arg1[%c0, %c0_0] : memref<128x1xi32, #tpu.memory_space<vmem>>, vector<128x1xi32>
    %2 = vector.broadcast %1 : vector<128x1xi32> to vector<128x64xi32>
    %3 = arith.cmpi eq, %2, %0 : vector<128x64xi32>
    %4 = arith.extui %3 : vector<128x64xi1> to vector<128x64xi32>
    %5 = arith.sitofp %4 : vector<128x64xi32> to vector<128x64xf32>
    %c0_1 = arith.constant 0 : index
    %c0_2 = arith.constant 0 : index
    %6 = vector.load %arg3[%c0_1, %c0_2] : memref<64x128xf32, #tpu.memory_space<vmem>>, vector<64x128xf32>
    %cst = arith.constant dense<0.000000e+00> : vector<128x128xf32>
    %7 = tpu.matmul %5, %6, %cst {dimension_numbers = #tpu.dot_dimension_numbers<[1], [0], [0], [1], [0, 0, 1, 1], [], []>} : vector<128x64xf32>, vector<64x128xf32>, vector<128x128xf32> -> vector<128x128xf32>
    %c0_3 = arith.constant 0 : index
    %c0_4 = arith.constant 0 : index
    %8 = vector.load %arg4[%c0_3, %c0_4] : memref<128x128xf32, #tpu.memory_space<vmem>>, vector<128x128xf32>
    %cst_5 = arith.constant dense<0.000000e+00> : vector<128x128xf32>
    %9 = tpu.matmul %7, %8, %cst_5 {dimension_numbers = #tpu.dot_dimension_numbers<[1], [0], [0], [1], [0, 0, 1, 1], [], []>} : vector<128x128xf32>, vector<128x128xf32>, vector<128x128xf32> -> vector<128x128xf32>
    %c0_6 = arith.constant 0 : index
    %c0_7 = arith.constant 0 : index
    %10 = vector.load %arg5[%c0_6, %c0_7] : memref<1x128xf32, #tpu.memory_space<vmem>>, vector<1x128xf32>
    %11 = vector.broadcast %10 : vector<1x128xf32> to vector<128x128xf32>
    %12 = arith.addf %9, %11 : vector<128x128xf32>
    %c0_8 = arith.constant 0 : index
    %c0_9 = arith.constant 0 : index
    %13 = vector.load %arg2[%c0_8, %c0_9] : memref<128x1xf32, #tpu.memory_space<vmem>>, vector<128x1xf32>
    %14 = vector.broadcast %13 : vector<128x1xf32> to vector<128x128xf32>
    %15 = arith.mulf %12, %14 : vector<128x128xf32>
    %c0_10 = arith.constant 0 : index
    %c0_11 = arith.constant 0 : index
    %16 = vector.load %arg6[%c0_10, %c0_11] : memref<128x128xf32, #tpu.memory_space<vmem>>, vector<128x128xf32>
    tpu.vector_store %arg6[%c0_10, %c0_11], %15 {strides = array<i32>} : memref<128x128xf32, #tpu.memory_space<vmem>>, vector<128x128xf32>,
    return
  }
  func.func @transform_0(%arg0: i32) -> (i32, i32) {
    %c0_i32 = arith.constant 0 : i32
    %c0_i32_0 = arith.constant 0 : i32
    return %arg0, %c0_i32 : i32, i32
  }
  func.func @transform_1(%arg0: i32) -> (i32, i32) {
    %c0_i32 = arith.constant 0 : i32
    %c0_i32_0 = arith.constant 0 : i32
    return %arg0, %c0_i32 : i32, i32
  }
  func.func @transform_2(%arg0: i32) -> (i32, i32) {
    %c0_i32 = arith.constant 0 : i32
    %c0_i32_0 = arith.constant 0 : i32
    %c0_i32_1 = arith.constant 0 : i32
    return %c0_i32, %c0_i32_0 : i32, i32
  }
  func.func @transform_3(%arg0: i32) -> (i32, i32) {
    %c0_i32 = arith.constant 0 : i32
    %c0_i32_0 = arith.constant 0 : i32
    %c0_i32_1 = arith.constant 0 : i32
    return %c0_i32, %c0_i32_0 : i32, i32
  }
  func.func @transform_4(%arg0: i32) -> (i32, i32) {
    %c0_i32 = arith.constant 0 : i32
    %c0_i32_0 = arith.constant 0 : i32
    %c0_i32_1 = arith.constant 0 : i32
    return %c0_i32, %c0_i32_0 : i32, i32
  }
  func.func @transform_5(%arg0: i32) -> (i32, i32) {
    %c0_i32 = arith.constant 0 : i32
    %c0_i32_0 = arith.constant 0 : i32
    return %arg0, %c0_i32 : i32, i32
  }
}

</mosaic_0001>

<llo_original>
// kernel: tpu_custom_call.1
$region0: #{tpu_custom_call.1}
  #allocation0 [shape = 'u32[]', space=smem, size = 0x4, offset = 0x4, fixed_abs, tag = 'smem constant byte address 0x4 - core index']
  #allocation1 [shape = 'u32[144,128]{1,0:T(1,128)}', space=vmem, size = 0x12000, scoped, tag = 'internal scratch']
  %s0 = inlined_call_operand.vmem [shape: s32[128,1], index: 0, kind: input, shape index: {}]
  %s1 = inlined_call_operand.vmem [shape: f32[128,1], index: 1, kind: input, shape index: {}]
  %s2 = inlined_call_operand.vmem [shape: f32[64,128], index: 2, kind: input, shape index: {}]
  %s3 = inlined_call_operand.vmem [shape: f32[128,128], index: 3, kind: input, shape index: {}]
  %s4 = inlined_call_operand.vmem [shape: f32[1,128], index: 4, kind: input, shape index: {}]
  %s5 = inlined_call_operand.hbm [shape: f32[128,128], index: 5, kind: output, shape index: {}]
  %s6 = sld [smem:[#allocation0]]
  $region30: #{tpu_custom_call.1} parent=0
    _
  %s8 = ssub.s32 1, %s6
  %s9 = scalar_select 0, %s8, %s6
  $region1: #{tpu_custom_call.1} parent=0
    #allocation2 [shape = 'u8[65536]{0}', space=vmem, size = 0x10000, scoped, tag = 'output window, operand 0, single buffered']
    #allocation3 [shape = 's32[1]{0}', space=sflag, size = 0x4, scoped, tag = 'scoped memory for tpu_custom_call.1']
    %10 = vsyncpa [#allocation3], 0
    // Predicated region
    $region2: #{tpu_custom_call.1} parent=1 // pred_check
      _
    $region3: #{tpu_custom_call.1} parent=1 // pred_check_branch
      %12 = sbr.rel (0) target = $region5
    $region4: #{tpu_custom_call.1} parent=1 // pred_region
      _
    $region5: #{tpu_custom_call.1} parent=1 // pred_fallthru
      _
    // Predicated region
    $region6: #{tpu_custom_call.1} parent=1 // pred_check
      _
    $region7: #{tpu_custom_call.1} parent=1 // pred_check_branch
      %14 = sbr.rel (0) target = $region9
    $region8: #{tpu_custom_call.1} parent=1 // pred_region
      _
    $region9: #{tpu_custom_call.1} parent=1 // pred_fallthru
      _
    // Predicated region
    $region10: #{tpu_custom_call.1} parent=1 // pred_check
      _
    $region11: #{tpu_custom_call.1} parent=1 // pred_check_branch
      %16 = sbr.rel (0) target = $region13
    $region12: #{tpu_custom_call.1} parent=1 // pred_region
      _
    $region13: #{tpu_custom_call.1} parent=1 // pred_fallthru
      _
    // Predicated region
    $region14: #{tpu_custom_call.1} parent=1 // pred_check
      _
    $region15: #{tpu_custom_call.1} parent=1 // pred_check_branch
      %18 = sbr.rel (0) target = $region17
    $region16: #{tpu_custom_call.1} parent=1 // pred_region
      _
    $region17: #{tpu_custom_call.1} parent=1 // pred_fallthru
      _
    // Predicated region
    $region18: #{tpu_custom_call.1} parent=1 // pred_check
      _
    $region19: #{tpu_custom_call.1} parent=1 // pred_check_branch
      %20 = sbr.rel (0) target = $region21
    $region20: #{tpu_custom_call.1} parent=1 // pred_region
      _
    $region21: #{tpu_custom_call.1} parent=1 // pred_fallthru
      _
    %v21 = vlaneseq
    %v22 = vand.u32 %v21, 127
    %v23 = vld [vmem:[%s0] sm:$0xff]
    %v24 = vld [vmem:[%s0 + $0x8] sm:$0xff]
    %v25 = vld [vmem:[%s0 + $0x10] sm:$0xff]
    %v26 = vld [vmem:[%s0 + $0x18] sm:$0xff]
    %v27 = vld [vmem:[%s0 + $0x20] sm:$0xff]
    %v28 = vld [vmem:[%s0 + $0x28] sm:$0xff]
    %v29 = vld [vmem:[%s0 + $0x30] sm:$0xff]
    %v30 = vld [vmem:[%s0 + $0x38] sm:$0xff]
    %v31 = vld [vmem:[%s0 + $0x40] sm:$0xff]
    %v32 = vld [vmem:[%s0 + $0x48] sm:$0xff]
    %v33 = vld [vmem:[%s0 + $0x50] sm:$0xff]
    %v34 = vld [vmem:[%s0 + $0x58] sm:$0xff]
    %v35 = vld [vmem:[%s0 + $0x60] sm:$0xff]
    %v36 = vld [vmem:[%s0 + $0x68] sm:$0xff]
    %v37 = vld [vmem:[%s0 + $0x70] sm:$0xff]
    %v38 = vld [vmem:[%s0 + $0x78] sm:$0xff]
    %39 = vset.pattern.permute.xlu0 0
    %40 = vperm.xlu0 %39, %v23
    %v41 = vpop.permute.xlu0 %40
    %42 = vset.pattern.permute.xlu0 0
    %43 = vperm.xlu0 %42, %v24
    %v44 = vpop.permute.xlu0 %43
    %45 = vset.pattern.permute.xlu0 0
    %46 = vperm.xlu0 %45, %v25
    %v47 = vpop.permute.xlu0 %46
    %48 = vset.pattern.permute.xlu0 0
    %49 = vperm.xlu0 %48, %v26
    %v50 = vpop.permute.xlu0 %49
    %51 = vset.pattern.permute.xlu0 0
    %52 = vperm.xlu0 %51, %v27
    %v53 = vpop.permute.xlu0 %52
    %54 = vset.pattern.permute.xlu0 0
    %55 = vperm.xlu0 %54, %v28
    %v56 = vpop.permute.xlu0 %55
    %57 = vset.pattern.permute.xlu0 0
    %58 = vperm.xlu0 %57, %v29
    %v59 = vpop.permute.xlu0 %58
    %60 = vset.pattern.permute.xlu0 0
    %61 = vperm.xlu0 %60, %v30
    %v62 = vpop.permute.xlu0 %61
    %63 = vset.pattern.permute.xlu0 0
    %64 = vperm.xlu0 %63, %v31
    %v65 = vpop.permute.xlu0 %64
    %66 = vset.pattern.permute.xlu0 0
    %67 = vperm.xlu0 %66, %v32
    %v68 = vpop.permute.xlu0 %67
    %69 = vset.pattern.permute.xlu0 0
    %70 = vperm.xlu0 %69, %v33
    %v71 = vpop.permute.xlu0 %70
    %72 = vset.pattern.permute.xlu0 0
    %73 = vperm.xlu0 %72, %v34
    %v74 = vpop.permute.xlu0 %73
    %75 = vset.pattern.permute.xlu0 0
    %76 = vperm.xlu0 %75, %v35
    %v77 = vpop.permute.xlu0 %76
    %78 = vset.pattern.permute.xlu0 0
    %79 = vperm.xlu0 %78, %v36
    %v80 = vpop.permute.xlu0 %79
    %81 = vset.pattern.permute.xlu0 0
    %82 = vperm.xlu0 %81, %v37
    %v83 = vpop.permute.xlu0 %82
    %84 = vset.pattern.permute.xlu0 0
    %85 = vperm.xlu0 %84, %v38
    %v86 = vpop.permute.xlu0 %85
    %vm87 = vcmp.eq.s32.totalorder %v41, %v22
    %vm88 = vcmp.eq.s32.totalorder %v44, %v22
    %vm89 = vcmp.eq.s32.totalorder %v47, %v22
    %vm90 = vcmp.eq.s32.totalorder %v50, %v22
    %vm91 = vcmp.eq.s32.totalorder %v53, %v22
    %vm92 = vcmp.eq.s32.totalorder %v56, %v22
    %vm93 = vcmp.eq.s32.totalorder %v59, %v22
    %vm94 = vcmp.eq.s32.totalorder %v62, %v22
    %vm95 = vcmp.eq.s32.totalorder %v65, %v22
    %vm96 = vcmp.eq.s32.totalorder %v68, %v22
    %vm97 = vcmp.eq.s32.totalorder %v71, %v22
    %vm98 = vcmp.eq.s32.totalorder %v74, %v22
    %vm99 = vcmp.eq.s32.totalorder %v77, %v22
    %vm100 = vcmp.eq.s32.totalorder %v80, %v22
    %vm101 = vcmp.eq.s32.totalorder %v83, %v22
    %vm102 = vcmp.eq.s32.totalorder %v86, %v22
    %v103 = vsel %vm87, 1, 0
    %v104 = vsel %vm88, 1, 0
    %v105 = vsel %vm89, 1, 0
    %v106 = vsel %vm90, 1, 0
    %v107 = vsel %vm91, 1, 0
    %v108 = vsel %vm92, 1, 0
    %v109 = vsel %vm93, 1, 0
    %v110 = vsel %vm94, 1, 0
    %v111 = vsel %vm95, 1, 0
    %v112 = vsel %vm96, 1, 0
    %v113 = vsel %vm97, 1, 0
    %v114 = vsel %vm98, 1, 0
    %v115 = vsel %vm99, 1, 0
    %v116 = vsel %vm100, 1, 0
    %v117 = vsel %vm101, 1, 0
    %v118 = vsel %vm102, 1, 0
    %v119 = vcvt.s32.f32 %v103
    %v120 = vcvt.s32.f32 %v104
    %v121 = vcvt.s32.f32 %v105
    %v122 = vcvt.s32.f32 %v106
    %v123 = vcvt.s32.f32 %v107
    %v124 = vcvt.s32.f32 %v108
    %v125 = vcvt.s32.f32 %v109
    %v126 = vcvt.s32.f32 %v110
    %v127 = vcvt.s32.f32 %v111
    %v128 = vcvt.s32.f32 %v112
    %v129 = vcvt.s32.f32 %v113
    %v130 = vcvt.s32.f32 %v114
    %v131 = vcvt.s32.f32 %v115
    %v132 = vcvt.s32.f32 %v116
    %v133 = vcvt.s32.f32 %v117
    %v134 = vcvt.s32.f32 %v118
    %v135 = vld [vmem:[%s2] sm:$0xff]
    %v136 = vld [vmem:[%s2 + $0x8] sm:$0xff]
    %v137 = vld [vmem:[%s2 + $0x10] sm:$0xff]
    %v138 = vld [vmem:[%s2 + $0x18] sm:$0xff]
    %v139 = vld [vmem:[%s2 + $0x20] sm:$0xff]
    %v140 = vld [vmem:[%s2 + $0x28] sm:$0xff]
    %v141 = vld [vmem:[%s2 + $0x30] sm:$0xff]
    %v142 = vld [vmem:[%s2 + $0x38] sm:$0xff]
    %vm143 = vcmask 523264
    %v145 = vsel %vm143, %v119, 0
    %v148 = vsel %vm143, %v120, 0
    %v151 = vsel %vm143, %v121, 0
    %v154 = vsel %vm143, %v122, 0
    %v157 = vsel %vm143, %v123, 0
    %v160 = vsel %vm143, %v124, 0
    %v163 = vsel %vm143, %v125, 0
    %v166 = vsel %vm143, %v126, 0
    %v169 = vsel %vm143, %v127, 0
    %v172 = vsel %vm143, %v128, 0
    %v175 = vsel %vm143, %v129, 0
    %v178 = vsel %vm143, %v130, 0
    %v181 = vsel %vm143, %v131, 0
    %v184 = vsel %vm143, %v132, 0
    %v187 = vsel %vm143, %v133, 0
    %v190 = vsel %vm143, %v134, 0
    %192 = vmatprep.subr.mxu0 0.0
    %193 = vmatpush1.msra.mxu0 %v135
    %194 = vmatprep.subr.mxu0 0.0
    %195 = vmatpush1.msra.mxu0 %v136
    %196 = vmatprep.subr.mxu0 0.0
    %197 = vmatpush1.msra.mxu0 %v137
    %198 = vmatprep.subr.mxu0 0.0
    %199 = vmatpush1.msra.mxu0 %v138
    %200 = vmatprep.subr.mxu0 0.0
    %201 = vmatpush1.msra.mxu0 %v139
    %202 = vmatprep.subr.mxu0 0.0
    %203 = vmatpush1.msra.mxu0 %v140
    %204 = vmatprep.subr.mxu0 0.0
    %205 = vmatpush1.msra.mxu0 %v141
    %206 = vmatprep.subr.mxu0 0.0
    %207 = vmatpush1.msra.mxu0 %v142
    %208 = vmatprep.subr.mxu0 0.0
    %209 = vmatpush1.msra.mxu0 0.0
    %210 = vmatprep.subr.mxu0 0.0
    %211 = vmatpush1.msra.mxu0 0.0
    %212 = vmatprep.subr.mxu0 0.0
    %213 = vmatpush1.msra.mxu0 0.0
    %214 = vmatprep.subr.mxu0 0.0
    %215 = vmatpush1.msra.mxu0 0.0
    %216 = vmatprep.subr.mxu0 0.0
    %217 = vmatpush1.msra.mxu0 0.0
    %218 = vmatprep.subr.mxu0 0.0
    %219 = vmatpush1.msra.mxu0 0.0
    %220 = vmatprep.subr.mxu0 0.0
    %221 = vmatpush1.msra.mxu0 0.0
    %222 = vmatprep.subr.mxu0 0.0
    %223 = vmatpush1.msra.mxu0 0.0
    %224 = vmatprep.subr.mxu0 0.0
    %225 = vmatpush1.msra.mxu0 0.0
    %226 = vmatprep.subr.mxu0 0.0
    %227 = vmatpush1.msra.mxu0 0.0
    %228 = vmatprep.subr.mxu0 0.0
    %229 = vmatpush1.msra.mxu0 0.0
    %230 = vmatprep.subr.mxu0 0.0
    %231 = vmatpush1.msra.mxu0 0.0
    %232 = vmatprep.subr.mxu0 0.0
    %233 = vmatpush1.msra.mxu0 0.0
    %234 = vmatprep.subr.mxu0 0.0
    %235 = vmatpush1.msra.mxu0 0.0
    %236 = vmatprep.subr.mxu0 0.0
    %237 = vmatpush1.msra.mxu0 0.0
    %238 = vmatprep.subr.mxu0 0.0
    %239 = vmatpush1.msra.mxu0 0.0
    %240 = vmatprep.subr.mxu0 0.0
    %241 = vmatpush1.msra.mxu0 0.0
    %242 = vmatprep.subr.mxu0 0.0
    %243 = vmatpush1.msra.mxu0 0.0
    %244 = vmatprep.subr.mxu0 0.0
    %245 = vmatpush1.msra.mxu0 0.0
    %246 = vmatprep.subr.mxu0 0.0
    %247 = vmatpush1.msra.mxu0 0.0
    %248 = vmatprep.subr.mxu0 0.0
    %249 = vmatpush1.msra.mxu0 0.0
    %250 = vmatprep.subr.mxu0 0.0
    %251 = vmatpush1.msra.mxu0 0.0
    %252 = vmatprep.subr.mxu0 0.0
    %253 = vmatpush1.msra.mxu0 0.0
    %254 = vmatprep.subr.mxu0 0.0
    %255 = vmatpush1.msra.mxu0 0.0
    %256 = vmatprep.mubr.f32.mxu0 0.0
    %257 = vmatmul.mubr.f32.gmra.mrb[0].mxu0 %v145
    %v258 = vpop.f32.mrb[0].mxu0
    %v259 = vadd.f32 0.0, %v258
    %v260 = vpop.f32.mrb[0].mxu0
    %261 = vmatprep.mubr.f32.mxu0 0.0
    %262 = vmatmul.mubr.f32.gmra.mrb[0].mxu0 %v148
    %v263 = vpop.f32.mrb[0].mxu0
    %v264 = vadd.f32 0.0, %v263
    %v265 = vpop.f32.mrb[0].mxu0
    %266 = vmatprep.mubr.f32.mxu0 0.0
    %267 = vmatmul.mubr.f32.gmra.mrb[0].mxu0 %v151
    %v268 = vpop.f32.mrb[0].mxu0
    %v269 = vadd.f32 0.0, %v268
    %v270 = vpop.f32.mrb[0].mxu0
    %271 = vmatprep.mubr.f32.mxu0 0.0
    %272 = vmatmul.mubr.f32.gmra.mrb[0].mxu0 %v154
    %v273 = vpop.f32.mrb[0].mxu0
    %v274 = vadd.f32 0.0, %v273
    %v275 = vpop.f32.mrb[0].mxu0
    %276 = vmatprep.mubr.f32.mxu0 0.0
    %277 = vmatmul.mubr.f32.gmra.mrb[0].mxu0 %v157
    %v278 = vpop.f32.mrb[0].mxu0
    %v279 = vadd.f32 0.0, %v278
    %v280 = vpop.f32.mrb[0].mxu0
    %281 = vmatprep.mubr.f32.mxu0 0.0
    %282 = vmatmul.mubr.f32.gmra.mrb[0].mxu0 %v160
    %v283 = vpop.f32.mrb[0].mxu0
    %v284 = vadd.f32 0.0, %v283
    %v285 = vpop.f32.mrb[0].mxu0
    %286 = vmatprep.mubr.f32.mxu0 0.0
    %287 = vmatmul.mubr.f32.gmra.mrb[0].mxu0 %v163
    %v288 = vpop.f32.mrb[0].mxu0
    %v289 = vadd.f32 0.0, %v288
    %v290 = vpop.f32.mrb[0].mxu0
    %291 = vmatprep.mubr.f32.mxu0 0.0
    %292 = vmatmul.mubr.f32.gmra.mrb[0].mxu0 %v166
    %v293 = vpop.f32.mrb[0].mxu0
    %v294 = vadd.f32 0.0, %v293
    %v295 = vpop.f32.mrb[0].mxu0
    %296 = vmatprep.mubr.f32.mxu0 0.0
    %297 = vmatmul.mubr.f32.gmra.mrb[0].mxu0 %v169
    %v298 = vpop.f32.mrb[0].mxu0
    %v299 = vadd.f32 0.0, %v298
    %v300 = vpop.f32.mrb[0].mxu0
    %301 = vmatprep.mubr.f32.mxu0 0.0
    %302 = vmatmul.mubr.f32.gmra.mrb[0].mxu0 %v172
    %v303 = vpop.f32.mrb[0].mxu0
    %v304 = vadd.f32 0.0, %v303
    %v305 = vpop.f32.mrb[0].mxu0
    %306 = vmatprep.mubr.f32.mxu0 0.0
    %307 = vmatmul.mubr.f32.gmra.mrb[0].mxu0 %v175
    %v308 = vpop.f32.mrb[0].mxu0
    %v309 = vadd.f32 0.0, %v308
    %v310 = vpop.f32.mrb[0].mxu0
    %311 = vmatprep.mubr.f32.mxu0 0.0
    %312 = vmatmul.mubr.f32.gmra.mrb[0].mxu0 %v178
    %v313 = vpop.f32.mrb[0].mxu0
    %v314 = vadd.f32 0.0, %v313
    %v315 = vpop.f32.mrb[0].mxu0
    %316 = vmatprep.mubr.f32.mxu0 0.0
    %317 = vmatmul.mubr.f32.gmra.mrb[0].mxu0 %v181
    %v318 = vpop.f32.mrb[0].mxu0
    %v319 = vadd.f32 0.0, %v318
    %v320 = vpop.f32.mrb[0].mxu0
    %321 = vmatprep.mubr.f32.mxu0 0.0
    %322 = vmatmul.mubr.f32.gmra.mrb[0].mxu0 %v184
    %v323 = vpop.f32.mrb[0].mxu0
    %v324 = vadd.f32 0.0, %v323
    %v325 = vpop.f32.mrb[0].mxu0
    %326 = vmatprep.mubr.f32.mxu0 0.0
    %327 = vmatmul.mubr.f32.gmra.mrb[0].mxu0 %v187
    %v328 = vpop.f32.mrb[0].mxu0
    %v329 = vadd.f32 0.0, %v328
    %v330 = vpop.f32.mrb[0].mxu0
    %331 = vmatprep.mubr.f32.mxu0 0.0
    %332 = vmatmul.mubr.f32.gmra.mrb[0].mxu0 %v190
    %v333 = vpop.f32.mrb[0].mxu0
    %v334 = vadd.f32 0.0, %v333
    %v335 = vpop.f32.mrb[0].mxu0
    %336 = vdwg.mxu0
    %v337 = vld [vmem:[%s3] sm:$0xff]
    %v338 = vld [vmem:[%s3 + $0x8] sm:$0xff]
    %v339 = vld [vmem:[%s3 + $0x10] sm:$0xff]
    %v340 = vld [vmem:[%s3 + $0x18] sm:$0xff]
    %v341 = vld [vmem:[%s3 + $0x20] sm:$0xff]
    %v342 = vld [vmem:[%s3 + $0x28] sm:$0xff]
    %v343 = vld [vmem:[%s3 + $0x30] sm:$0xff]
    %v344 = vld [vmem:[%s3 + $0x38] sm:$0xff]
    %v345 = vld [vmem:[%s3 + $0x40] sm:$0xff]
    %v346 = vld [vmem:[%s3 + $0x48] sm:$0xff]
    %v347 = vld [vmem:[%s3 + $0x50] sm:$0xff]
    %v348 = vld [vmem:[%s3 + $0x58] sm:$0xff]
    %v349 = vld [vmem:[%s3 + $0x60] sm:$0xff]
    %v350 = vld [vmem:[%s3 + $0x68] sm:$0xff]
    %v351 = vld [vmem:[%s3 + $0x70] sm:$0xff]
    %v352 = vld [vmem:[%s3 + $0x78] sm:$0xff]
    %v353 = vld [vmem:[%s4] sm:$0x1]
    %v355 = vlaneseq
    %v356 = vshrl.u32 %v355, 7
    %v357 = vsub.s32 0, %v356
    %v358 = vrot.slane %v353, %v357
    %360 = vmatprep.subr.mxu0 0.0
    %361 = vmatpush1.msra.mxu0 %v337
    %362 = vmatprep.subr.mxu0 0.0
    %363 = vmatpush1.msra.mxu0 %v338
    %364 = vmatprep.subr.mxu0 0.0
    %365 = vmatpush1.msra.mxu0 %v339
    %366 = vmatprep.subr.mxu0 0.0
    %367 = vmatpush1.msra.mxu0 %v340
    %368 = vmatprep.subr.mxu0 0.0
    %369 = vmatpush1.msra.mxu0 %v341
    %370 = vmatprep.subr.mxu0 0.0
    %371 = vmatpush1.msra.mxu0 %v342
    %372 = vmatprep.subr.mxu0 0.0
    %373 = vmatpush1.msra.mxu0 %v343
    %374 = vmatprep.subr.mxu0 0.0
    %375 = vmatpush1.msra.mxu0 %v344
    %376 = vmatprep.subr.mxu0 0.0
    %377 = vmatpush1.msra.mxu0 %v345
    %378 = vmatprep.subr.mxu0 0.0
    %379 = vmatpush1.msra.mxu0 %v346
    %380 = vmatprep.subr.mxu0 0.0
    %381 = vmatpush1.msra.mxu0 %v347
    %382 = vmatprep.subr.mxu0 0.0
    %383 = vmatpush1.msra.mxu0 %v348
    %384 = vmatprep.subr.mxu0 0.0
    %385 = vmatpush1.msra.mxu0 %v349
    %386 = vmatprep.subr.mxu0 0.0
    %387 = vmatpush1.msra.mxu0 %v350
    %388 = vmatprep.subr.mxu0 0.0
    %389 = vmatpush1.msra.mxu0 %v351
    %390 = vmatprep.subr.mxu0 0.0
    %391 = vmatpush1.msra.mxu0 %v352
    %392 = vmatprep.subr.mxu0 0.0
    %393 = vmatpush1.msra.mxu0 0.0
    %394 = vmatprep.subr.mxu0 0.0
    %395 = vmatpush1.msra.mxu0 0.0
    %396 = vmatprep.subr.mxu0 0.0
    %397 = vmatpush1.msra.mxu0 0.0
    %398 = vmatprep.subr.mxu0 0.0
    %399 = vmatpush1.msra.mxu0 0.0
    %400 = vmatprep.subr.mxu0 0.0
    %401 = vmatpush1.msra.mxu0 0.0
    %402 = vmatprep.subr.mxu0 0.0
    %403 = vmatpush1.msra.mxu0 0.0
    %404 = vmatprep.subr.mxu0 0.0
    %405 = vmatpush1.msra.mxu0 0.0
    %406 = vmatprep.subr.mxu0 0.0
    %407 = vmatpush1.msra.mxu0 0.0
    %408 = vmatprep.subr.mxu0 0.0
    %409 = vmatpush1.msra.mxu0 0.0
    %410 = vmatprep.subr.mxu0 0.0
    %411 = vmatpush1.msra.mxu0 0.0
    %412 = vmatprep.subr.mxu0 0.0
    %413 = vmatpush1.msra.mxu0 0.0
    %414 = vmatprep.subr.mxu0 0.0
    %415 = vmatpush1.msra.mxu0 0.0
    %416 = vmatprep.subr.mxu0 0.0
    %417 = vmatpush1.msra.mxu0 0.0
    %418 = vmatprep.subr.mxu0 0.0
    %419 = vmatpush1.msra.mxu0 0.0
    %420 = vmatprep.subr.mxu0 0.0
    %421 = vmatpush1.msra.mxu0 0.0
    %422 = vmatprep.subr.mxu0 0.0
    %423 = vmatpush1.msra.mxu0 0.0
    %424 = vmatprep.mubr.f32.mxu0 0.0
    %425 = vmatmul.mubr.f32.gmra.mrb[0].mxu0 %v259
    %v426 = vpop.f32.mrb[0].mxu0
    %v427 = vadd.f32 %v358, %v426
    %v428 = vpop.f32.mrb[0].mxu0
    %429 = vmatprep.mubr.f32.mxu0 0.0
    %430 = vmatmul.mubr.f32.gmra.mrb[0].mxu0 %v264
    %v431 = vpop.f32.mrb[0].mxu0
    %v432 = vadd.f32 %v358, %v431
    %v433 = vpop.f32.mrb[0].mxu0
    %434 = vmatprep.mubr.f32.mxu0 0.0
    %435 = vmatmul.mubr.f32.gmra.mrb[0].mxu0 %v269
    %v436 = vpop.f32.mrb[0].mxu0
    %v437 = vadd.f32 %v358, %v436
    %v438 = vpop.f32.mrb[0].mxu0
    %439 = vmatprep.mubr.f32.mxu0 0.0
    %440 = vmatmul.mubr.f32.gmra.mrb[0].mxu0 %v274
    %v441 = vpop.f32.mrb[0].mxu0
    %v442 = vadd.f32 %v358, %v441
    %v443 = vpop.f32.mrb[0].mxu0
    %444 = vmatprep.mubr.f32.mxu0 0.0
    %445 = vmatmul.mubr.f32.gmra.mrb[0].mxu0 %v279
    %v446 = vpop.f32.mrb[0].mxu0
    %v447 = vadd.f32 %v358, %v446
    %v448 = vpop.f32.mrb[0].mxu0
    %449 = vmatprep.mubr.f32.mxu0 0.0
    %450 = vmatmul.mubr.f32.gmra.mrb[0].mxu0 %v284
    %v451 = vpop.f32.mrb[0].mxu0
    %v452 = vadd.f32 %v358, %v451
    %v453 = vpop.f32.mrb[0].mxu0
    %454 = vmatprep.mubr.f32.mxu0 0.0
    %455 = vmatmul.mubr.f32.gmra.mrb[0].mxu0 %v289
    %v456 = vpop.f32.mrb[0].mxu0
    %v457 = vadd.f32 %v358, %v456
    %v458 = vpop.f32.mrb[0].mxu0
    %459 = vmatprep.mubr.f32.mxu0 0.0
    %460 = vmatmul.mubr.f32.gmra.mrb[0].mxu0 %v294
    %v461 = vpop.f32.mrb[0].mxu0
    %v462 = vadd.f32 %v358, %v461
    %v463 = vpop.f32.mrb[0].mxu0
    %464 = vmatprep.mubr.f32.mxu0 0.0
    %465 = vmatmul.mubr.f32.gmra.mrb[0].mxu0 %v299
    %v466 = vpop.f32.mrb[0].mxu0
    %v467 = vadd.f32 %v358, %v466
    %v468 = vpop.f32.mrb[0].mxu0
    %469 = vmatprep.mubr.f32.mxu0 0.0
    %470 = vmatmul.mubr.f32.gmra.mrb[0].mxu0 %v304
    %v471 = vpop.f32.mrb[0].mxu0
    %v472 = vadd.f32 %v358, %v471
    %v473 = vpop.f32.mrb[0].mxu0
    %474 = vmatprep.mubr.f32.mxu0 0.0
    %475 = vmatmul.mubr.f32.gmra.mrb[0].mxu0 %v309
    %v476 = vpop.f32.mrb[0].mxu0
    %v477 = vadd.f32 %v358, %v476
    %v478 = vpop.f32.mrb[0].mxu0
    %479 = vmatprep.mubr.f32.mxu0 0.0
    %480 = vmatmul.mubr.f32.gmra.mrb[0].mxu0 %v314
    %v481 = vpop.f32.mrb[0].mxu0
    %v482 = vadd.f32 %v358, %v481
    %v483 = vpop.f32.mrb[0].mxu0
    %484 = vmatprep.mubr.f32.mxu0 0.0
    %485 = vmatmul.mubr.f32.gmra.mrb[0].mxu0 %v319
    %v486 = vpop.f32.mrb[0].mxu0
    %v487 = vadd.f32 %v358, %v486
    %v488 = vpop.f32.mrb[0].mxu0
    %489 = vmatprep.mubr.f32.mxu0 0.0
    %490 = vmatmul.mubr.f32.gmra.mrb[0].mxu0 %v324
    %v491 = vpop.f32.mrb[0].mxu0
    %v492 = vadd.f32 %v358, %v491
    %v493 = vpop.f32.mrb[0].mxu0
    %494 = vmatprep.mubr.f32.mxu0 0.0
    %495 = vmatmul.mubr.f32.gmra.mrb[0].mxu0 %v329
    %v496 = vpop.f32.mrb[0].mxu0
    %v497 = vadd.f32 %v358, %v496
    %v498 = vpop.f32.mrb[0].mxu0
    %499 = vmatprep.mubr.f32.mxu0 0.0
    %500 = vmatmul.mubr.f32.gmra.mrb[0].mxu0 %v334
    %v501 = vpop.f32.mrb[0].mxu0
    %v502 = vadd.f32 %v358, %v501
    %v503 = vpop.f32.mrb[0].mxu0
    %504 = vdwg.mxu0
    %v505 = vld [vmem:[%s1] sm:$0xff]
    %v506 = vld [vmem:[%s1 + $0x8] sm:$0xff]
    %v507 = vld [vmem:[%s1 + $0x10] sm:$0xff]
    %v508 = vld [vmem:[%s1 + $0x18] sm:$0xff]
    %v509 = vld [vmem:[%s1 + $0x20] sm:$0xff]
    %v510 = vld [vmem:[%s1 + $0x28] sm:$0xff]
    %v511 = vld [vmem:[%s1 + $0x30] sm:$0xff]
    %v512 = vld [vmem:[%s1 + $0x38] sm:$0xff]
    %v513 = vld [vmem:[%s1 + $0x40] sm:$0xff]
    %v514 = vld [vmem:[%s1 + $0x48] sm:$0xff]
    %v515 = vld [vmem:[%s1 + $0x50] sm:$0xff]
    %v516 = vld [vmem:[%s1 + $0x58] sm:$0xff]
    %v517 = vld [vmem:[%s1 + $0x60] sm:$0xff]
    %v518 = vld [vmem:[%s1 + $0x68] sm:$0xff]
    %v519 = vld [vmem:[%s1 + $0x70] sm:$0xff]
    %v520 = vld [vmem:[%s1 + $0x78] sm:$0xff]
    %522 = vset.pattern.permute.xlu0 0
    %523 = vperm.xlu0 %522, %v505
    %v524 = vpop.permute.xlu0 %523
    %527 = vset.pattern.permute.xlu0 0
    %528 = vperm.xlu0 %527, %v506
    %v529 = vpop.permute.xlu0 %528
    %532 = vset.pattern.permute.xlu0 0
    %533 = vperm.xlu0 %532, %v507
    %v534 = vpop.permute.xlu0 %533
    %537 = vset.pattern.permute.xlu0 0
    %538 = vperm.xlu0 %537, %v508
    %v539 = vpop.permute.xlu0 %538
    %542 = vset.pattern.permute.xlu0 0
    %543 = vperm.xlu0 %542, %v509
    %v544 = vpop.permute.xlu0 %543
    %547 = vset.pattern.permute.xlu0 0
    %548 = vperm.xlu0 %547, %v510
    %v549 = vpop.permute.xlu0 %548
    %552 = vset.pattern.permute.xlu0 0
    %553 = vperm.xlu0 %552, %v511
    %v554 = vpop.permute.xlu0 %553
    %557 = vset.pattern.permute.xlu0 0
    %558 = vperm.xlu0 %557, %v512
    %v559 = vpop.permute.xlu0 %558
    %562 = vset.pattern.permute.xlu0 0
    %563 = vperm.xlu0 %562, %v513
    %v564 = vpop.permute.xlu0 %563
    %567 = vset.pattern.permute.xlu0 0
    %568 = vperm.xlu0 %567, %v514
    %v569 = vpop.permute.xlu0 %568
    %572 = vset.pattern.permute.xlu0 0
    %573 = vperm.xlu0 %572, %v515
    %v574 = vpop.permute.xlu0 %573
    %577 = vset.pattern.permute.xlu0 0
    %578 = vperm.xlu0 %577, %v516
    %v579 = vpop.permute.xlu0 %578
    %582 = vset.pattern.permute.xlu0 0
    %583 = vperm.xlu0 %582, %v517
    %v584 = vpop.permute.xlu0 %583
    %587 = vset.pattern.permute.xlu0 0
    %588 = vperm.xlu0 %587, %v518
    %v589 = vpop.permute.xlu0 %588
    %592 = vset.pattern.permute.xlu0 0
    %593 = vperm.xlu0 %592, %v519
    %v594 = vpop.permute.xlu0 %593
    %597 = vset.pattern.permute.xlu0 0
    %598 = vperm.xlu0 %597, %v520
    %v599 = vpop.permute.xlu0 %598
    %v601 = vmul.f32 %v427, %v524
    %v602 = vmul.f32 %v432, %v529
    %v603 = vmul.f32 %v437, %v534
    %v604 = vmul.f32 %v442, %v539
    %v605 = vmul.f32 %v447, %v544
    %v606 = vmul.f32 %v452, %v549
    %v607 = vmul.f32 %v457, %v554
    %v608 = vmul.f32 %v462, %v559
    %v609 = vmul.f32 %v467, %v564
    %v610 = vmul.f32 %v472, %v569
    %v611 = vmul.f32 %v477, %v574
    %v612 = vmul.f32 %v482, %v579
    %v613 = vmul.f32 %v487, %v584
    %v614 = vmul.f32 %v492, %v589
    %v615 = vmul.f32 %v497, %v594
    %v616 = vmul.f32 %v502, %v599
    %617 = vst [vmem:[#allocation2] sm:$0xff] %v601
    %618 = vst [vmem:[#allocation2 + $0x8] sm:$0xff] %v602
    %619 = vst [vmem:[#allocation2 + $0x10] sm:$0xff] %v603
    %620 = vst [vmem:[#allocation2 + $0x18] sm:$0xff] %v604
    %621 = vst [vmem:[#allocation2 + $0x20] sm:$0xff] %v605
    %622 = vst [vmem:[#allocation2 + $0x28] sm:$0xff] %v606
    %623 = vst [vmem:[#allocation2 + $0x30] sm:$0xff] %v607
    %624 = vst [vmem:[#allocation2 + $0x38] sm:$0xff] %v608
    %625 = vst [vmem:[#allocation2 + $0x40] sm:$0xff] %v609
    %626 = vst [vmem:[#allocation2 + $0x48] sm:$0xff] %v610
    %627 = vst [vmem:[#allocation2 + $0x50] sm:$0xff] %v611
    %628 = vst [vmem:[#allocation2 + $0x58] sm:$0xff] %v612
    %629 = vst [vmem:[#allocation2 + $0x60] sm:$0xff] %v613
    %630 = vst [vmem:[#allocation2 + $0x68] sm:$0xff] %v614
    %631 = vst [vmem:[#allocation2 + $0x70] sm:$0xff] %v615
    %632 = vst [vmem:[#allocation2 + $0x78] sm:$0xff] %v616
    // Predicated region
    $region22: #{tpu_custom_call.1} parent=1 // pred_check
      _
    $region23: #{tpu_custom_call.1} parent=1 // pred_check_branch
      %634 = sbr.rel (0) target = $region25
    $region24: #{tpu_custom_call.1} parent=1 // pred_region
      %s636 = ssub.s32 2048, 2048
      %637 = vsyncadd [#allocation3], %s636
      %s638 = sshll.u32 [#allocation2], 4
      %s639 = int_to_ptr.vmem [resolvable:$true] %s638
      %644 = dma.vmem_to_hbm [thread:$0]  %s639, 2048, %s5, [#allocation3], 128, 128, 8
    $region25: #{tpu_custom_call.1} parent=1 // pred_fallthru
      _
    // Predicated region
    $region26: #{tpu_custom_call.1} parent=1 // pred_check
      _
    $region27: #{tpu_custom_call.1} parent=1 // pred_check_branch
      %646 = sbr.rel (0) target = $region29
    $region28: #{tpu_custom_call.1} parent=1 // pred_region
      %647 = dma.done [#allocation3], 2048
    $region29: #{tpu_custom_call.1} parent=1 // pred_fallthru
      _
    %648 = vsyncpa [#allocation3], 1

</llo_original>
